<compile_context>
chip_gen: v7x
topology: tpu7x:2x2x1
jax: 0.10.0
libtpu: 0.0.40
codegen_flags: <defaults>
</compile_context>

<pallas_src>
import jax
import jax.numpy as jnp
from jax.experimental import pallas as pl
from jax.experimental.pallas import tpu as pltpu


# ----------------------------------------------------------------------------
# Config (mirrors the PyTorch module's __init__ expectations)
# ----------------------------------------------------------------------------
CONFIG = {
    "arch_kwargs": {
        "backbone": "tiny-gap",   # synthetic backbone
        "nbit": 16,               # hash code length
        "nclass": 8,              # number of classes
        "pretrained": False,
        "freeze_weight": False,
        "bias": False,            # default per .get('bias', False)
    },
    "loss_param": {},
}

FEAT_DIM = 32                     # backbone feature width
LANE = 128                        # TPU lane width
COMPUTE_DTYPE = jnp.bfloat16      # MXU operand dtype


def _round_up(n, m):
    return ((n + m - 1) // m) * m


def _choose_batch_tile(B):
    """Rows per grid step: exact for tiny B, else >=2 steps (v7x megacore),
    multiple of 16, capped at 512 rows/step."""
    if B <= 16:
        return B
    half = -(-B // 2)
    return max(16, min(512, _round_up(half, 16)))


# ----------------------------------------------------------------------------
# Kernel: in-kernel GAP -> backbone Linear -> ReLU -> hash Linear -> tanh
#         -> classifier Linear, packed lane-dense output.
# ----------------------------------------------------------------------------
def _make_kernel(inv_hw, has_bias):
    def kernel(*refs):
        if has_bias:
            x_ref, wb_ref, wh_ref, bh_ref, wc_ref, out_ref = refs
        else:
            x_ref, wb_ref, wh_ref, wc_ref, out_ref = refs
            bh_ref = None

        # x_ref: [TB, C, HW] f32.  GAP = lane reduce on the XLU; the exact
        # 1/HW scale is applied to the f32 accumulator, and only the tiny
        # pooled tensor is cast to bf16 (no wrapper-side bf16 copy of x).
        pooled = jnp.sum(x_ref[...], axis=-1) * inv_hw             # [TB, C] f32

        # Backbone projection (MXU, K=C), f32 accumulation, ReLU in f32.
        feats = jnp.dot(pooled.astype(COMPUTE_DTYPE), wb_ref[...],
                        preferred_element_type=jnp.float32)        # [TB, F_P]
        feats = jnp.maximum(feats, 0.0)

        # Hash layer.  wh columns are pre-placed at [nclass, nclass+nbit), so
        # the real codes already sit at their packed position; padded columns
        # stay exactly 0 (tanh(0) = 0, bias padding = 0).
        codes_lin = jnp.dot(feats.astype(COMPUTE_DTYPE), wh_ref[...],
                            preferred_element_type=jnp.float32)    # [TB, OUT_W]
        if has_bias:
            codes_lin = codes_lin + bh_ref[...]                    # [1, OUT_W] f32
        codes = jnp.tanh(codes_lin)                                # f32 EUP

        # Classifier.  wc rows live at [nclass, nclass+nbit) and columns at
        # [0, nclass), so logits occupy cols [0, nclass) and are 0 elsewhere.
        logits = jnp.dot(codes.astype(COMPUTE_DTYPE), wc_ref[...],
                         preferred_element_type=jnp.float32)       # [TB, OUT_W]

        # Packed lane-dense store: [logits | exact f32 codes | zero padding].
        out_ref[...] = (logits + codes).astype(out_ref.dtype)

    return kernel


# ----------------------------------------------------------------------------
# Wrapper: host-side layout prep + pallas_call
# ----------------------------------------------------------------------------
def basearch_forward(x_nchw, params, *, bias=None):
    """x_nchw: [B, C, H, W] float32.  Returns (logits [B, nclass], codes [B, nbit])."""
    B, C, H, W = x_nchw.shape
    HW = H * W

    wb, wh, wc = params
    F = wb.shape[1]
    nbit = wh.shape[1]
    nclass = wc.shape[1]

    F_P = _round_up(F, LANE)                 # lane-aligned feature width
    OUT_W = _round_up(nclass + nbit, LANE)   # packed output width (logits|codes)

    TB = _choose_batch_tile(B)
    grid = (-(-B // TB),)                    # cdiv; boundary blocks are masked

    # Weight layout prep (tiny, done once per call; resident in VMEM).
    wb_p = jnp.zeros((C, F_P), COMPUTE_DTYPE).at[:, :F].set(
        wb.astype(COMPUTE_DTYPE))                                     # [C, F_P]
    wh_p = jnp.zeros((F_P, OUT_W), COMPUTE_DTYPE).at[:F, nclass:nclass + nbit].set(
        wh.astype(COMPUTE_DTYPE))                                     # [F_P, OUT_W]
    wc_p = jnp.zeros((OUT_W, OUT_W), COMPUTE_DTYPE).at[nclass:nclass + nbit, :nclass].set(
        wc.astype(COMPUTE_DTYPE))                                     # [OUT_W, OUT_W]

    # x stays f32; reshape is metadata-only (no cast, no pad, no extra HBM pass).
    x3 = x_nchw.reshape(B, C, HW)

    has_bias = bias is not None
    inputs = [x3, wb_p, wh_p]
    in_specs = [
        pl.BlockSpec((TB, C, HW), lambda i: (i, 0, 0)),    # x: tiled over batch
        pl.BlockSpec((C, F_P), lambda i: (0, 0)),          # weights stay resident
        pl.BlockSpec((F_P, OUT_W), lambda i: (0, 0)),
    ]
    if has_bias:
        bh_p = jnp.zeros((1, OUT_W), jnp.float32).at[0, nclass:nclass + nbit].set(
            bias.astype(jnp.float32))
        inputs.append(bh_p)
        in_specs.append(pl.BlockSpec((1, OUT_W), lambda i: (0, 0)))
    inputs.append(wc_p)
    in_specs.append(pl.BlockSpec((OUT_W, OUT_W), lambda i: (0, 0)))

    out_shape = jax.ShapeDtypeStruct((B, OUT_W), jnp.float32)   # packed, lane-dense
    out_spec = pl.BlockSpec((TB, OUT_W), lambda i: (i, 0))

    # VMEM budget: double-buffered x/out tiles + resident weights + headroom,
    # clamped to [32 MiB, 64 MiB] so it is valid on v7x (64 MiB physical).
    c8 = _round_up(C, 8)
    tb8 = _round_up(TB, 8)
    x_tile_b = tb8 * c8 * HW * 4
    out_tile_b = tb8 * OUT_W * 4
    w_b = (c8 * F_P + F_P * OUT_W + OUT_W * OUT_W) * 2 + 8 * OUT_W * 4
    vmem_need = 2 * (x_tile_b + out_tile_b) + 2 * w_b + 6 * tb8 * OUT_W * 4
    vmem_limit = int(min(64 * 1024 * 1024, max(32 * 1024 * 1024, 2 * vmem_need)))

    cost = pl.CostEstimate(
        flops=2 * B * (C * HW + C * F_P + F_P * OUT_W + OUT_W * OUT_W),
        transcendentals=B * OUT_W,                       # tanh
        bytes_accessed=x3.size * 4
        + (wb_p.size + wh_p.size + wc_p.size) * 2
        + (OUT_W * 4 if has_bias else 0)
        + B * OUT_W * 4,
    )

    packed = pl.pallas_call(
        _make_kernel(1.0 / HW, has_bias),
        out_shape=out_shape,
        grid=grid,
        in_specs=in_specs,
        out_specs=out_spec,
        compiler_params=pltpu.CompilerParams(
            dimension_semantics=("parallel",),           # batch axis -> both TCs on v7x
            vmem_limit_bytes=vmem_limit,
        ),
        cost_estimate=cost,
    )(*inputs)

    # Split the packed row (glue only).
    logits = packed[:, :nclass]
    codes = packed[:, nclass:nclass + nbit]
    return logits, codes


# ----------------------------------------------------------------------------
# Deterministic parameter init (synthetic, no checkpoint loading)
# ----------------------------------------------------------------------------
def init_params(key, C, feat_dim, nbit, nclass):
    k1, k2, k3 = jax.random.split(key, 3)
    wb = jax.random.normal(k1, (C, feat_dim), jnp.float32) * 0.1
    wh = jax.random.normal(k2, (feat_dim, nbit), jnp.float32) * 0.1
    wc = jax.random.normal(k3, (nbit, nclass), jnp.float32) * 0.1
    return wb, wh, wc


def _reference_forward(x, params, bias=None):
    B, C, H, W = x.shape
    pooled = x.reshape(B, C, H * W).mean(-1)
    feats = jnp.maximum(pooled @ params[0], 0.0)
    hash_lin = feats @ params[1]
    if bias is not None:
        hash_lin = hash_lin + bias
    codes = jnp.tanh(hash_lin)
    logits = codes @ params[2]
    return logits, codes


if __name__ == "__main__":
    ak = CONFIG["arch_kwargs"]
    B, C, H, W = 2, 4, 16, 16

    key = jax.random.PRNGKey(0)
    kx, kp, kb = jax.random.split(key, 3)
    x = jax.random.normal(kx, (B, C, H, W), jnp.float32)
    params = init_params(kp, C, FEAT_DIM, ak["nbit"], ak["nclass"])

    # Config default: bias=False -> no bias input / DMA.
    logits, codes = basearch_forward(x, params, bias=None)
    jax.block_until_ready((logits, codes))
    assert logits.shape == (B, ak["nclass"])
    assert codes.shape == (B, ak["nbit"])

    logits_ref, codes_ref = _reference_forward(x, params, bias=None)
    assert jnp.allclose(codes, codes_ref, atol=3e-2, rtol=3e-2)
    assert jnp.allclose(logits, logits_ref, atol=3e-2, rtol=3e-2)

    # Also exercise the bias path (review correctness concern).
    hbias = jax.random.normal(kb, (ak["nbit"],), jnp.float32) * 0.1
    logits_b, codes_b = basearch_forward(x, params, bias=hbias)
    jax.block_until_ready((logits_b, codes_b))
    logits_bref, codes_bref = _reference_forward(x, params, bias=hbias)
    assert jnp.allclose(codes_b, codes_bref, atol=3e-2, rtol=3e-2)
    assert jnp.allclose(logits_b, logits_bref, atol=3e-2, rtol=3e-2)

    print("KERNEL_OK")
</pallas_src>

<mosaic_0001>
module attributes {stable_mosaic.version = 11 : i64} {
  func.func @kernel(%arg0: i32, %arg1: memref<2x4x256xf32, #tpu.memory_space<vmem>>, %arg2: memref<4x128xbf16, #tpu.memory_space<vmem>>, %arg3: memref<128x128xbf16, #tpu.memory_space<vmem>>, %arg4: memref<128x128xbf16, #tpu.memory_space<vmem>>, %arg5: memref<2x128xf32, #tpu.memory_space<vmem>>) attributes {dimension_semantics = [#tpu.dimension_semantics<parallel>], iteration_bounds = array<i64: 1>, scalar_prefetch = 0 : i64, scratch_operands = 0 : i64, tpu.core_type = #tpu.core_type<tc>, window_params = [{transform_indices = @transform_0, window_bounds = array<i64: 2, 4, 256>}, {pipeline_mode = #tpu.pipeline_mode<synchronous>, transform_indices = @transform_1, window_bounds = array<i64: 4, 128>}, {pipeline_mode = #tpu.pipeline_mode<synchronous>, transform_indices = @transform_2, window_bounds = array<i64: 128, 128>}, {pipeline_mode = #tpu.pipeline_mode<synchronous>, transform_indices = @transform_3, window_bounds = array<i64: 128, 128>}, {transform_indices = @transform_4, window_bounds = array<i64: 2, 128>}]} {
    %c0 = arith.constant 0 : index
    %c0_0 = arith.constant 0 : index
    %c0_1 = arith.constant 0 : index
    %0 = vector.load %arg1[%c0, %c0_0, %c0_1] : memref<2x4x256xf32, #tpu.memory_space<vmem>>, vector<2x4x256xf32>
    %cst = arith.constant dense<0.000000e+00> : vector<2x4xf32>
    %1 = vector.multi_reduction <add>, %0, %cst [2] : vector<2x4x256xf32> to vector<2x4xf32>
    %cst_2 = arith.constant 3.906250e-03 : f32
    %2 = vector.broadcast %cst_2 : f32 to vector<2x4xf32>
    %3 = arith.mulf %1, %2 : vector<2x4xf32>
    %4 = arith.truncf %3 : vector<2x4xf32> to vector<2x4xbf16>
    %c0_3 = arith.constant 0 : index
    %c0_4 = arith.constant 0 : index
    %5 = vector.load %arg2[%c0_3, %c0_4] : memref<4x128xbf16, #tpu.memory_space<vmem>>, vector<4x128xbf16>
    %cst_5 = arith.constant dense<0.000000e+00> : vector<2x128xf32>
    %6 = tpu.matmul %4, %5, %cst_5 {dimension_numbers = #tpu.dot_dimension_numbers<[1], [0], [0], [1], [0, 0, 1, 1], [], []>} : vector<2x4xbf16>, vector<4x128xbf16>, vector<2x128xf32> -> vector<2x128xf32>
    %cst_6 = arith.constant 0.000000e+00 : f32
    %7 = vector.broadcast %cst_6 : f32 to vector<2x128xf32>
    %8 = arith.maximumf %6, %7 : vector<2x128xf32>
    %9 = arith.truncf %8 : vector<2x128xf32> to vector<2x128xbf16>
    %c0_7 = arith.constant 0 : index
    %c0_8 = arith.constant 0 : index
    %10 = vector.load %arg3[%c0_7, %c0_8] : memref<128x128xbf16, #tpu.memory_space<vmem>>, vector<128x128xbf16>
    %cst_9 = arith.constant dense<0.000000e+00> : vector<2x128xf32>
    %11 = tpu.matmul %9, %10, %cst_9 {dimension_numbers = #tpu.dot_dimension_numbers<[1], [0], [0], [1], [0, 0, 1, 1], [], []>} : vector<2x128xbf16>, vector<128x128xbf16>, vector<2x128xf32> -> vector<2x128xf32>
    %12 = math.tanh %11 : vector<2x128xf32>
    %13 = arith.truncf %12 : vector<2x128xf32> to vector<2x128xbf16>
    %c0_10 = arith.constant 0 : index
    %c0_11 = arith.constant 0 : index
    %14 = vector.load %arg4[%c0_10, %c0_11] : memref<128x128xbf16, #tpu.memory_space<vmem>>, vector<128x128xbf16>
    %cst_12 = arith.constant dense<0.000000e+00> : vector<2x128xf32>
    %15 = tpu.matmul %13, %14, %cst_12 {dimension_numbers = #tpu.dot_dimension_numbers<[1], [0], [0], [1], [0, 0, 1, 1], [], []>} : vector<2x128xbf16>, vector<128x128xbf16>, vector<2x128xf32> -> vector<2x128xf32>
    %16 = arith.addf %15, %12 : vector<2x128xf32>
    %c0_13 = arith.constant 0 : index
    %c0_14 = arith.constant 0 : index
    %17 = vector.load %arg5[%c0_13, %c0_14] : memref<2x128xf32, #tpu.memory_space<vmem>>, vector<2x128xf32>
    tpu.vector_store %arg5[%c0_13, %c0_14], %16 {strides = array<i32>} : memref<2x128xf32, #tpu.memory_space<vmem>>, vector<2x128xf32>,
    return
  }
  func.func @transform_0(%arg0: i32) -> (i32, i32, i32) {
    %c0_i32 = arith.constant 0 : i32
    %c0_i32_0 = arith.constant 0 : i32
    %c0_i32_1 = arith.constant 0 : i32
    return %arg0, %c0_i32, %c0_i32_0 : i32, i32, i32
  }
  func.func @transform_1(%arg0: i32) -> (i32, i32) {
    %c0_i32 = arith.constant 0 : i32
    %c0_i32_0 = arith.constant 0 : i32
    %c0_i32_1 = arith.constant 0 : i32
    return %c0_i32, %c0_i32_0 : i32, i32
  }
  func.func @transform_2(%arg0: i32) -> (i32, i32) {
    %c0_i32 = arith.constant 0 : i32
    %c0_i32_0 = arith.constant 0 : i32
    %c0_i32_1 = arith.constant 0 : i32
    return %c0_i32, %c0_i32_0 : i32, i32
  }
  func.func @transform_3(%arg0: i32) -> (i32, i32) {
    %c0_i32 = arith.constant 0 : i32
    %c0_i32_0 = arith.constant 0 : i32
    %c0_i32_1 = arith.constant 0 : i32
    return %c0_i32, %c0_i32_0 : i32, i32
  }
  func.func @transform_4(%arg0: i32) -> (i32, i32) {
    %c0_i32 = arith.constant 0 : i32
    %c0_i32_0 = arith.constant 0 : i32
    return %arg0, %c0_i32 : i32, i32
  }
}

</mosaic_0001>

<llo_original>
// kernel: tpu_custom_call.1
$region0: #{tpu_custom_call.1}
  #allocation0 [shape = 'u32[]', space=smem, size = 0x4, offset = 0x4, fixed_abs, tag = 'smem constant byte address 0x4 - core index']
  #allocation1 [shape = 'u32[144,128]{1,0:T(1,128)}', space=vmem, size = 0x12000, scoped, tag = 'internal scratch']
  %s0 = inlined_call_operand.hbm [shape: f32[2,4,256], index: 0, kind: input, shape index: {}]
  %s1 = inlined_call_operand.vmem [shape: bf16[4,128], index: 1, kind: input, shape index: {}]
  %s2 = inlined_call_operand.hbm [shape: bf16[128,128], index: 2, kind: input, shape index: {}]
  %s3 = inlined_call_operand.hbm [shape: bf16[128,128], index: 3, kind: input, shape index: {}]
  %s4 = inlined_call_operand.hbm [shape: f32[2,128], index: 4, kind: output, shape index: {}]
  %s5 = sld [smem:[#allocation0]]
  $region38: #{tpu_custom_call.1} parent=0
    _
  %s7 = ssub.s32 1, %s5
  %s8 = scalar_select 0, %s7, %s5
  $region1: #{tpu_custom_call.1} parent=0
    #allocation2 [shape = 'u8[8192]{0}', space=vmem, size = 0x2000, scoped, tag = 'input window, operand 0, single buffered']
    #allocation3 [shape = 's32[1]{0}', space=sflag, size = 0x4, scoped, tag = 'scoped memory for tpu_custom_call.1']
    #allocation4 [shape = 's32[1]{0}', space=sflag, size = 0x4, scoped, tag = 'scoped memory for tpu_custom_call.1']
    #allocation5 [shape = 'u8[32768]{0}', space=vmem, size = 0x8000, scoped, tag = 'input window, operand 2, single buffered']
    #allocation6 [shape = 's32[1]{0}', space=sflag, size = 0x4, scoped, tag = 'scoped memory for tpu_custom_call.1']
    #allocation7 [shape = 'u8[32768]{0}', space=vmem, size = 0x8000, scoped, tag = 'input window, operand 3, single buffered']
    #allocation8 [shape = 'u8[1024]{0}', space=vmem, size = 0x400, scoped, tag = 'output window, operand 0, single buffered']
    %9 = vsyncpa [#allocation3], 0
    %10 = vsyncpa [#allocation6], 0
    %11 = vsyncpa [#allocation4], 0
    // Predicated region
    $region2: #{tpu_custom_call.1} parent=1 // pred_check
      _
    $region3: #{tpu_custom_call.1} parent=1 // pred_check_branch
      %13 = sbr.rel (0) target = $region5
    $region4: #{tpu_custom_call.1} parent=1 // pred_region
      %s15 = ssub.s32 256, 256
      %16 = vsyncadd [#allocation3], %s15
      %s17 = sshll.u32 [#allocation2], 4
      %s18 = int_to_ptr.vmem [resolvable:$true] %s17
      %23 = dma.hbm_to_vmem [thread:$0]  %s0, 256, %s18, [#allocation3], 128, 128, 8
    $region5: #{tpu_custom_call.1} parent=1 // pred_fallthru
      _
    // Predicated region
    $region6: #{tpu_custom_call.1} parent=1 // pred_check
      _
    $region7: #{tpu_custom_call.1} parent=1 // pred_check_branch
      %25 = sbr.rel (0) target = $region9
    $region8: #{tpu_custom_call.1} parent=1 // pred_region
      _
    $region9: #{tpu_custom_call.1} parent=1 // pred_fallthru
      _
    // Predicated region
    $region10: #{tpu_custom_call.1} parent=1 // pred_check
      _
    $region11: #{tpu_custom_call.1} parent=1 // pred_check_branch
      %27 = sbr.rel (0) target = $region13
    $region12: #{tpu_custom_call.1} parent=1 // pred_region
      %s29 = ssub.s32 1024, 1024
      %30 = vsyncadd [#allocation6], %s29
      %s31 = sshll.u32 [#allocation5], 4
      %s32 = int_to_ptr.vmem [resolvable:$true] %s31
      %37 = dma.hbm_to_vmem [thread:$0]  %s2, 1024, %s32, [#allocation6], 64, 64, 4
    $region13: #{tpu_custom_call.1} parent=1 // pred_fallthru
      _
    // Predicated region
    $region14: #{tpu_custom_call.1} parent=1 // pred_check
      _
    $region15: #{tpu_custom_call.1} parent=1 // pred_check_branch
      %39 = sbr.rel (0) target = $region17
    $region16: #{tpu_custom_call.1} parent=1 // pred_region
      %s41 = ssub.s32 1024, 1024
      %42 = vsyncadd [#allocation6], %s41
      %s43 = sshll.u32 [#allocation7], 4
      %s44 = int_to_ptr.vmem [resolvable:$true] %s43
      %49 = dma.hbm_to_vmem [thread:$0]  %s3, 1024, %s44, [#allocation6], 64, 64, 4
    $region17: #{tpu_custom_call.1} parent=1 // pred_fallthru
      _
    // Predicated region
    $region18: #{tpu_custom_call.1} parent=1 // pred_check
      _
    $region19: #{tpu_custom_call.1} parent=1 // pred_check_branch
      %51 = sbr.rel (0) target = $region21
    $region20: #{tpu_custom_call.1} parent=1 // pred_region
      %52 = dma.done [#allocation3], 256
    $region21: #{tpu_custom_call.1} parent=1 // pred_fallthru
      _
    // Predicated region
    $region22: #{tpu_custom_call.1} parent=1 // pred_check
      _
    $region23: #{tpu_custom_call.1} parent=1 // pred_check_branch
      %54 = sbr.rel (0) target = $region25
    $region24: #{tpu_custom_call.1} parent=1 // pred_region
      %55 = dma.done [#allocation6], 1024
    $region25: #{tpu_custom_call.1} parent=1 // pred_fallthru
      _
    // Predicated region
    $region26: #{tpu_custom_call.1} parent=1 // pred_check
      _
    $region27: #{tpu_custom_call.1} parent=1 // pred_check_branch
      %57 = sbr.rel (0) target = $region29
    $region28: #{tpu_custom_call.1} parent=1 // pred_region
      %58 = dma.done [#allocation6], 1024
    $region29: #{tpu_custom_call.1} parent=1 // pred_fallthru
      _
    %v60 = vld [vmem:[#allocation2] sm:$0xff]
    %v61 = vld [vmem:[#allocation2 + $0x8] sm:$0xff]
    %v64 = vcombine.high %v60, %v60
    %v65 = vcombine.high %v61, %v61
    %vm68 = vcmask 1043456
    %v69 = vsel %vm68, %v60, 0.0
    %v70 = vsel %vm68, %v64, 0.0
    %v71 = vadd.f32 %v69, %v70
    %72 = vadd.xlane.f32.xlu0 %v71
    %v73 = vpop.xlane.xlu0 %72
    %v74 = vsel %vm68, %v61, 0.0
    %v75 = vsel %vm68, %v65, 0.0
    %v76 = vadd.f32 %v74, %v75
    %77 = vadd.xlane.f32.xlu0 %v76
    %v78 = vpop.xlane.xlu0 %77
    %v79 = vmul.f32 %v73, 0.00390625
    %v80 = vmul.f32 %v78, 0.00390625
    %v81 = vpack.c.bf16 %v79, %v79
    %v82 = vpack.c.bf16 %v80, %v80
    %v83 = vld [vmem:[%s1] sm:$0x3]
    %v86 = vunpack.c.l.b16 %v81
    %v87 = vunpack.c.l.b16 %v82
    %v88 = vlaneseq
    %v89 = vand.u32 %v88, 127
    %v90 = vlaneseq
    %v91 = vshrl.u32 %v90, 7
    %v92 = vsub.s32 %v89, %v91
    %v93 = vrot.slane %v86, %v92
    %v94 = vlaneseq
    %v95 = vshrl.u32 %v94, 7
    %v96 = vsub.s32 %v89, %v95
    %v97 = vrot.slane %v87, %v96
    %vm98 = vcmask 1041409
    %v99 = vsel %vm98, %v97, %v93
    %v100 = vpack.c.b16 %v99, %v99
    %vm101 = vcmask 31744
    %v103 = vsel %vm101, %v100, 0
    %vm105 = vcmask 1041408
    %v107 = vsel %vm105, %v83, 0
    %109 = vmatprep.subr.bf16.mxu0 0
    %110 = vmatpush1.bf16.msra.mxu0 %v107
    %111 = vmatprep.subr.bf16.mxu0 0
    %112 = vmatpush1.bf16.msra.mxu0 0
    %113 = vmatprep.subr.bf16.mxu0 0
    %114 = vmatpush1.bf16.msra.mxu0 0
    %115 = vmatprep.subr.bf16.mxu0 0
    %116 = vmatpush1.bf16.msra.mxu0 0
    %117 = vmatprep.subr.bf16.mxu0 0
    %118 = vmatpush1.bf16.msra.mxu0 0
    %119 = vmatprep.subr.bf16.mxu0 0
    %120 = vmatpush1.bf16.msra.mxu0 0
    %121 = vmatprep.subr.bf16.mxu0 0
    %122 = vmatpush1.bf16.msra.mxu0 0
    %123 = vmatprep.subr.bf16.mxu0 0
    %124 = vmatpush1.bf16.msra.mxu0 0
    %125 = vmatprep.subr.bf16.mxu0 0
    %126 = vmatpush1.bf16.msra.mxu0 0
    %127 = vmatprep.subr.bf16.mxu0 0
    %128 = vmatpush1.bf16.msra.mxu0 0
    %129 = vmatprep.subr.bf16.mxu0 0
    %130 = vmatpush1.bf16.msra.mxu0 0
    %131 = vmatprep.subr.bf16.mxu0 0
    %132 = vmatpush1.bf16.msra.mxu0 0
    %133 = vmatprep.subr.bf16.mxu0 0
    %134 = vmatpush1.bf16.msra.mxu0 0
    %135 = vmatprep.subr.bf16.mxu0 0
    %136 = vmatpush1.bf16.msra.mxu0 0
    %137 = vmatprep.subr.bf16.mxu0 0
    %138 = vmatpush1.bf16.msra.mxu0 0
    %139 = vmatprep.subr.bf16.mxu0 0
    %140 = vmatpush1.bf16.msra.mxu0 0
    %141 = vmatprep.mubr.bf16.mxu0 0
    %142 = vmatmul.mubr.bf16.gmra.mrb[0].mxu0 %v103
    %v143 = vpop.f32.mrb[0].mxu0
    %v144 = vadd.f32 0.0, %v143
    %v145 = vpop.f32.mrb[0].mxu0
    %v146 = vpop.f32.mrb[0].mxu0
    %v147 = vpop.f32.mrb[0].mxu0
    %148 = vdwg.mxu0
    %v149 = vmax.f32 %v144, 0.0
    %v150 = vpack.c.bf16 %v149, %v149
    %v151 = vld [vmem:[#allocation5] sm:$0xf]
    %v152 = vld [vmem:[#allocation5 + $0x4] sm:$0xf]
    %v153 = vld [vmem:[#allocation5 + $0x8] sm:$0xf]
    %v154 = vld [vmem:[#allocation5 + $0xc] sm:$0xf]
    %v155 = vld [vmem:[#allocation5 + $0x10] sm:$0xf]
    %v156 = vld [vmem:[#allocation5 + $0x14] sm:$0xf]
    %v157 = vld [vmem:[#allocation5 + $0x18] sm:$0xf]
    %v158 = vld [vmem:[#allocation5 + $0x1c] sm:$0xf]
    %v159 = vld [vmem:[#allocation5 + $0x20] sm:$0xf]
    %v160 = vld [vmem:[#allocation5 + $0x24] sm:$0xf]
    %v161 = vld [vmem:[#allocation5 + $0x28] sm:$0xf]
    %v162 = vld [vmem:[#allocation5 + $0x2c] sm:$0xf]
    %v163 = vld [vmem:[#allocation5 + $0x30] sm:$0xf]
    %v164 = vld [vmem:[#allocation5 + $0x34] sm:$0xf]
    %v165 = vld [vmem:[#allocation5 + $0x38] sm:$0xf]
    %v166 = vld [vmem:[#allocation5 + $0x3c] sm:$0xf]
    %v183 = vunpack.c.l.b16 %v151
    %v184 = vunpack.c.l.b16 %v152
    %v185 = vunpack.c.l.b16 %v153
    %v186 = vunpack.c.l.b16 %v154
    %v187 = vunpack.c.l.b16 %v155
    %v188 = vunpack.c.l.b16 %v156
    %v189 = vunpack.c.l.b16 %v157
    %v190 = vunpack.c.l.b16 %v158
    %v191 = vunpack.c.l.b16 %v159
    %v192 = vunpack.c.l.b16 %v160
    %v193 = vunpack.c.l.b16 %v161
    %v194 = vunpack.c.l.b16 %v162
    %v195 = vunpack.c.l.b16 %v163
    %v196 = vunpack.c.l.b16 %v164
    %v197 = vunpack.c.l.b16 %v165
    %v198 = vunpack.c.l.b16 %v166
    %v199 = vpack.c.b16 %v184, %v183
    %v200 = vpack.c.b16 %v186, %v185
    %v201 = vpack.c.b16 %v188, %v187
    %v202 = vpack.c.b16 %v190, %v189
    %v203 = vpack.c.b16 %v192, %v191
    %v204 = vpack.c.b16 %v194, %v193
    %v205 = vpack.c.b16 %v196, %v195
    %v206 = vpack.c.b16 %v198, %v197
    %215 = vmatprep.subr.bf16.mxu0 0
    %216 = vmatpush1.bf16.msra.mxu0 %v199
    %217 = vmatprep.subr.bf16.mxu0 0
    %218 = vmatpush1.bf16.msra.mxu0 %v200
    %219 = vmatprep.subr.bf16.mxu0 0
    %220 = vmatpush1.bf16.msra.mxu0 %v201
    %221 = vmatprep.subr.bf16.mxu0 0
    %222 = vmatpush1.bf16.msra.mxu0 %v202
    %223 = vmatprep.subr.bf16.mxu0 0
    %224 = vmatpush1.bf16.msra.mxu0 %v203
    %225 = vmatprep.subr.bf16.mxu0 0
    %226 = vmatpush1.bf16.msra.mxu0 %v204
    %227 = vmatprep.subr.bf16.mxu0 0
    %228 = vmatpush1.bf16.msra.mxu0 %v205
    %229 = vmatprep.subr.bf16.mxu0 0
    %230 = vmatpush1.bf16.msra.mxu0 %v206
    %231 = vmatprep.subr.bf16.mxu0 0
    %232 = vmatpush1.bf16.msra.mxu0 0
    %233 = vmatprep.subr.bf16.mxu0 0
    %234 = vmatpush1.bf16.msra.mxu0 0
    %235 = vmatprep.subr.bf16.mxu0 0
    %236 = vmatpush1.bf16.msra.mxu0 0
    %237 = vmatprep.subr.bf16.mxu0 0
    %238 = vmatpush1.bf16.msra.mxu0 0
    %239 = vmatprep.subr.bf16.mxu0 0
    %240 = vmatpush1.bf16.msra.mxu0 0
    %241 = vmatprep.subr.bf16.mxu0 0
    %242 = vmatpush1.bf16.msra.mxu0 0
    %243 = vmatprep.subr.bf16.mxu0 0
    %244 = vmatpush1.bf16.msra.mxu0 0
    %245 = vmatprep.subr.bf16.mxu0 0
    %246 = vmatpush1.bf16.msra.mxu0 0
    %247 = vmatprep.mubr.bf16.mxu0 0
    %248 = vmatmul.mubr.bf16.gmra.mrb[0].mxu0 %v150
    %v249 = vpop.f32.mrb[0].mxu0
    %v250 = vadd.f32 0.0, %v249
    %v251 = vpop.f32.mrb[0].mxu0
    %v252 = vpop.f32.mrb[0].mxu0
    %v253 = vpop.f32.mrb[0].mxu0
    %254 = vdwg.mxu0
    %v255 = vtanh.pop %v250
    %v256 = vpack.c.bf16 %v255, %v255
    %v257 = vld [vmem:[#allocation7] sm:$0xf]
    %v258 = vld [vmem:[#allocation7 + $0x4] sm:$0xf]
    %v259 = vld [vmem:[#allocation7 + $0x8] sm:$0xf]
    %v260 = vld [vmem:[#allocation7 + $0xc] sm:$0xf]
    %v261 = vld [vmem:[#allocation7 + $0x10] sm:$0xf]
    %v262 = vld [vmem:[#allocation7 + $0x14] sm:$0xf]
    %v263 = vld [vmem:[#allocation7 + $0x18] sm:$0xf]
    %v264 = vld [vmem:[#allocation7 + $0x1c] sm:$0xf]
    %v265 = vld [vmem:[#allocation7 + $0x20] sm:$0xf]
    %v266 = vld [vmem:[#allocation7 + $0x24] sm:$0xf]
    %v267 = vld [vmem:[#allocation7 + $0x28] sm:$0xf]
    %v268 = vld [vmem:[#allocation7 + $0x2c] sm:$0xf]
    %v269 = vld [vmem:[#allocation7 + $0x30] sm:$0xf]
    %v270 = vld [vmem:[#allocation7 + $0x34] sm:$0xf]
    %v271 = vld [vmem:[#allocation7 + $0x38] sm:$0xf]
    %v272 = vld [vmem:[#allocation7 + $0x3c] sm:$0xf]
    %v289 = vunpack.c.l.b16 %v257
    %v290 = vunpack.c.l.b16 %v258
    %v291 = vunpack.c.l.b16 %v259
    %v292 = vunpack.c.l.b16 %v260
    %v293 = vunpack.c.l.b16 %v261
    %v294 = vunpack.c.l.b16 %v262
    %v295 = vunpack.c.l.b16 %v263
    %v296 = vunpack.c.l.b16 %v264
    %v297 = vunpack.c.l.b16 %v265
    %v298 = vunpack.c.l.b16 %v266
    %v299 = vunpack.c.l.b16 %v267
    %v300 = vunpack.c.l.b16 %v268
    %v301 = vunpack.c.l.b16 %v269
    %v302 = vunpack.c.l.b16 %v270
    %v303 = vunpack.c.l.b16 %v271
    %v304 = vunpack.c.l.b16 %v272
    %v305 = vpack.c.b16 %v290, %v289
    %v306 = vpack.c.b16 %v292, %v291
    %v307 = vpack.c.b16 %v294, %v293
    %v308 = vpack.c.b16 %v296, %v295
    %v309 = vpack.c.b16 %v298, %v297
    %v310 = vpack.c.b16 %v300, %v299
    %v311 = vpack.c.b16 %v302, %v301
    %v312 = vpack.c.b16 %v304, %v303
    %321 = vmatprep.subr.bf16.mxu0 0
    %322 = vmatpush1.bf16.msra.mxu0 %v305
    %323 = vmatprep.subr.bf16.mxu0 0
    %324 = vmatpush1.bf16.msra.mxu0 %v306
    %325 = vmatprep.subr.bf16.mxu0 0
    %326 = vmatpush1.bf16.msra.mxu0 %v307
    %327 = vmatprep.subr.bf16.mxu0 0
    %328 = vmatpush1.bf16.msra.mxu0 %v308
    %329 = vmatprep.subr.bf16.mxu0 0
    %330 = vmatpush1.bf16.msra.mxu0 %v309
    %331 = vmatprep.subr.bf16.mxu0 0
    %332 = vmatpush1.bf16.msra.mxu0 %v310
    %333 = vmatprep.subr.bf16.mxu0 0
    %334 = vmatpush1.bf16.msra.mxu0 %v311
    %335 = vmatprep.subr.bf16.mxu0 0
    %336 = vmatpush1.bf16.msra.mxu0 %v312
    %337 = vmatprep.subr.bf16.mxu0 0
    %338 = vmatpush1.bf16.msra.mxu0 0
    %339 = vmatprep.subr.bf16.mxu0 0
    %340 = vmatpush1.bf16.msra.mxu0 0
    %341 = vmatprep.subr.bf16.mxu0 0
    %342 = vmatpush1.bf16.msra.mxu0 0
    %343 = vmatprep.subr.bf16.mxu0 0
    %344 = vmatpush1.bf16.msra.mxu0 0
    %345 = vmatprep.subr.bf16.mxu0 0
    %346 = vmatpush1.bf16.msra.mxu0 0
    %347 = vmatprep.subr.bf16.mxu0 0
    %348 = vmatpush1.bf16.msra.mxu0 0
    %349 = vmatprep.subr.bf16.mxu0 0
    %350 = vmatpush1.bf16.msra.mxu0 0
    %351 = vmatprep.subr.bf16.mxu0 0
    %352 = vmatpush1.bf16.msra.mxu0 0
    %353 = vmatprep.mubr.bf16.mxu0 0
    %354 = vmatmul.mubr.bf16.gmra.mrb[0].mxu0 %v256
    %v355 = vpop.f32.mrb[0].mxu0
    %v356 = vadd.f32 %v255, %v355
    %v357 = vpop.f32.mrb[0].mxu0
    %v358 = vpop.f32.mrb[0].mxu0
    %v359 = vpop.f32.mrb[0].mxu0
    %360 = vdwg.mxu0
    %361 = vst [vmem:[#allocation8] sm:$0x3] %v356
    // Predicated region
    $region30: #{tpu_custom_call.1} parent=1 // pred_check
      _
    $region31: #{tpu_custom_call.1} parent=1 // pred_check_branch
      %363 = sbr.rel (0) target = $region33
    $region32: #{tpu_custom_call.1} parent=1 // pred_region
      %s365 = ssub.s32 32, 32
      %366 = vsyncadd [#allocation4], %s365
      %s368 = sshll.u32 [#allocation8], 4
      %s369 = int_to_ptr.vmem [resolvable:$true] %s368
      %371 = dma.vmem_to_hbm [thread:$0]  %s369, 32, %s4, [#allocation4]
    $region33: #{tpu_custom_call.1} parent=1 // pred_fallthru
      _
    // Predicated region
    $region34: #{tpu_custom_call.1} parent=1 // pred_check
      _
    $region35: #{tpu_custom_call.1} parent=1 // pred_check_branch
      %373 = sbr.rel (0) target = $region37
    $region36: #{tpu_custom_call.1} parent=1 // pred_region
      %374 = dma.done [#allocation4], 32
    $region37: #{tpu_custom_call.1} parent=1 // pred_fallthru
      _
    %375 = vsyncpa [#allocation3], 1
    %376 = vsyncpa [#allocation6], 1
    %377 = vsyncpa [#allocation4], 1

</llo_original>
